<compile_context>
chip_gen: v5e
topology: v5e:2x2
jax: 0.10.0
libtpu: 0.0.40
codegen_flags: <defaults>
</compile_context>

<pallas_src>
import functools

import jax
import jax.numpy as jnp
from jax.experimental import pallas as pl
from jax.experimental.pallas import tpu as pltpu

LANE = 128
SUBLANE = 8


def _round_up(x, m):
    return (x + m - 1) // m * m


def encoder_kernel(x_ref, w1_ref, b1_ref, w2_ref, b2_ref, emb_ref, pred_ref):
    # fc1: (TM, DP) @ (DP, HP) on the MXU, bf16 operands, f32 accumulation.
    h = jnp.dot(
        x_ref[...].astype(jnp.bfloat16),
        w1_ref[...].astype(jnp.bfloat16),
        preferred_element_type=jnp.float32,
    )
    # bias + ReLU in f32 on the VPU (avoids bf16 elementwise penalties on v5e).
    emb = jnp.maximum(h + b1_ref[...], 0.0)
    emb_ref[...] = emb.astype(emb_ref.dtype)

    # fc2: (TM, HP) @ (HP, DP) -> lane-dense (128-wide) pred store.
    p = jnp.dot(
        emb.astype(jnp.bfloat16),
        w2_ref[...].astype(jnp.bfloat16),
        preferred_element_type=jnp.float32,
    )
    pred_ref[...] = (p + b2_ref[...]).astype(pred_ref.dtype)


@functools.partial(jax.jit, static_argnames=("block_m",))
def encoder_forward(x, w1, b1, w2, b2, *, block_m=512):
    """x: (B, din); w1: (din, hidden); b1: (hidden,); w2: (hidden, din); b2: (din,).

    Weights are stored (in_features, out_features) so the kernel computes x @ W,
    matching PyTorch nn.Linear semantics (which stores W transposed).
    """
    B, din = x.shape
    hidden = w1.shape[1]
    assert w1.shape == (din, hidden) and w2.shape == (hidden, din)

    # Lane-pad feature dims to multiples of 128 (zero padding keeps the math exact).
    dp = _round_up(din, LANE)
    hp = _round_up(hidden, LANE)

    # Batch tile: big for large B (MXU utilization + pipelining), sublane-rounded
    # for small B. Pad the batch up to a multiple of the tile.
    tm = min(block_m, _round_up(B, SUBLANE))
    bp = _round_up(B, tm)
    grid = (bp // tm,)

    x_p = jnp.zeros((bp, dp), x.dtype).at[:B, :din].set(x)
    w1_p = jnp.zeros((dp, hp), w1.dtype).at[:din, :hidden].set(w1)
    b1_p = jnp.zeros((1, hp), b1.dtype).at[0, :hidden].set(b1)
    w2_p = jnp.zeros((hp, dp), w2.dtype).at[:hidden, :din].set(w2)
    b2_p = jnp.zeros((1, dp), b2.dtype).at[0, :din].set(b2)

    # Row-tiled activations; weights/biases resident in VMEM across the loop.
    row_spec = lambda cols: pl.BlockSpec((tm, cols), lambda i: (i, 0))
    res_spec = lambda shape: pl.BlockSpec(shape, lambda i: (0, 0))

    emb_p, pred_p = pl.pallas_call(
        encoder_kernel,
        out_shape=(
            jax.ShapeDtypeStruct((bp, hp), x.dtype),  # embedding (padded)
            jax.ShapeDtypeStruct((bp, dp), x.dtype),  # pred (padded)
        ),
        grid=grid,
        in_specs=[
            row_spec(dp),          # x tile
            res_spec((dp, hp)),    # W1 (resident)
            res_spec((1, hp)),     # b1 (resident)
            res_spec((hp, dp)),    # W2 (resident)
            res_spec((1, dp)),     # b2 (resident)
        ],
        out_specs=(
            row_spec(hp),          # embedding tile
            row_spec(dp),          # pred tile (lane-dense stores)
        ),
        compiler_params=pltpu.CompilerParams(
            dimension_semantics=("parallel",),  # megacore sharding on v7x
        ),
    )(x_p, w1_p, b1_p, w2_p, b2_p)

    return emb_p[:B, :hidden], pred_p[:B, :din]


def init_params(key, din=32, hidden_dim=128, dtype=jnp.float32):
    """Deterministic init mimicking nn.Linear default (uniform +/- 1/sqrt(fan_in))."""
    k1, k2, k3, k4 = jax.random.split(key, 4)
    bound1 = 1.0 / jnp.sqrt(din)
    bound2 = 1.0 / jnp.sqrt(hidden_dim)
    # Stored as (in_features, out_features) so the kernel computes x @ W.
    w1 = jax.random.uniform(k1, (din, hidden_dim), dtype, -bound1, bound1)
    b1 = jax.random.uniform(k2, (hidden_dim,), dtype, -bound1, bound1)
    w2 = jax.random.uniform(k3, (hidden_dim, din), dtype, -bound2, bound2)
    b2 = jax.random.uniform(k4, (din,), dtype, -bound2, bound2)
    return w1, b1, w2, b2


if __name__ == "__main__":
    din, hidden_dim, batch = 32, 128, 8
    key = jax.random.PRNGKey(0)
    kx, kp = jax.random.split(key)
    x = jax.random.normal(kx, (batch, din), jnp.float32)
    w1, b1, w2, b2 = init_params(kp, din, hidden_dim)

    emb, pred = encoder_forward(x, w1, b1, w2, b2)
    emb, pred = jax.block_until_ready((emb, pred))

    # Reference in plain f32 JAX. Kernel uses bf16 MXU operands with f32
    # accumulation, so tolerances are relaxed accordingly.
    emb_ref = jnp.maximum(x @ w1 + b1, 0.0)
    pred_ref = emb_ref @ w2 + b2
    assert emb.shape == (batch, hidden_dim) and pred.shape == (batch, din)
    assert jnp.allclose(emb, emb_ref, atol=3e-2, rtol=3e-2), "embedding mismatch"
    assert jnp.allclose(pred, pred_ref, atol=3e-2, rtol=3e-2), "pred mismatch"

    print("KERNEL_OK")
</pallas_src>

<mosaic_0001>
module attributes {stable_mosaic.version = 11 : i64} {
  func.func @encoder_kernel(%arg0: i32, %arg1: memref<8x128xf32, #tpu.memory_space<vmem>>, %arg2: memref<128x128xf32, #tpu.memory_space<vmem>>, %arg3: memref<1x128xf32, #tpu.memory_space<vmem>>, %arg4: memref<128x128xf32, #tpu.memory_space<vmem>>, %arg5: memref<1x128xf32, #tpu.memory_space<vmem>>, %arg6: memref<8x128xf32, #tpu.memory_space<vmem>>, %arg7: memref<8x128xf32, #tpu.memory_space<vmem>>) attributes {dimension_semantics = [#tpu.dimension_semantics<parallel>], iteration_bounds = array<i64: 1>, scalar_prefetch = 0 : i64, scratch_operands = 0 : i64, tpu.core_type = #tpu.core_type<tc>, window_params = [{transform_indices = @transform_0, window_bounds = array<i64: 8, 128>}, {pipeline_mode = #tpu.pipeline_mode<synchronous>, transform_indices = @transform_1, window_bounds = array<i64: 128, 128>}, {pipeline_mode = #tpu.pipeline_mode<synchronous>, transform_indices = @transform_2, window_bounds = array<i64: 1, 128>}, {pipeline_mode = #tpu.pipeline_mode<synchronous>, transform_indices = @transform_3, window_bounds = array<i64: 128, 128>}, {pipeline_mode = #tpu.pipeline_mode<synchronous>, transform_indices = @transform_4, window_bounds = array<i64: 1, 128>}, {transform_indices = @transform_5, window_bounds = array<i64: 8, 128>}, {transform_indices = @transform_6, window_bounds = array<i64: 8, 128>}]} {
    %c0 = arith.constant 0 : index
    %c0_0 = arith.constant 0 : index
    %0 = vector.load %arg1[%c0, %c0_0] : memref<8x128xf32, #tpu.memory_space<vmem>>, vector<8x128xf32>
    %1 = arith.truncf %0 : vector<8x128xf32> to vector<8x128xbf16>
    %c0_1 = arith.constant 0 : index
    %c0_2 = arith.constant 0 : index
    %2 = vector.load %arg2[%c0_1, %c0_2] : memref<128x128xf32, #tpu.memory_space<vmem>>, vector<128x128xf32>
    %3 = arith.truncf %2 : vector<128x128xf32> to vector<128x128xbf16>
    %cst = arith.constant dense<0.000000e+00> : vector<8x128xf32>
    %4 = tpu.matmul %1, %3, %cst {dimension_numbers = #tpu.dot_dimension_numbers<[1], [0], [0], [1], [0, 0, 1, 1], [], []>} : vector<8x128xbf16>, vector<128x128xbf16>, vector<8x128xf32> -> vector<8x128xf32>
    %c0_3 = arith.constant 0 : index
    %c0_4 = arith.constant 0 : index
    %5 = vector.load %arg3[%c0_3, %c0_4] : memref<1x128xf32, #tpu.memory_space<vmem>>, vector<1x128xf32>
    %6 = vector.broadcast %5 : vector<1x128xf32> to vector<8x128xf32>
    %7 = arith.addf %4, %6 : vector<8x128xf32>
    %cst_5 = arith.constant 0.000000e+00 : f32
    %8 = vector.broadcast %cst_5 : f32 to vector<8x128xf32>
    %9 = arith.maximumf %7, %8 : vector<8x128xf32>
    %c0_6 = arith.constant 0 : index
    %c0_7 = arith.constant 0 : index
    %10 = vector.load %arg6[%c0_6, %c0_7] : memref<8x128xf32, #tpu.memory_space<vmem>>, vector<8x128xf32>
    tpu.vector_store %arg6[%c0_6, %c0_7], %9 {strides = array<i32>} : memref<8x128xf32, #tpu.memory_space<vmem>>, vector<8x128xf32>,
    %11 = arith.truncf %9 : vector<8x128xf32> to vector<8x128xbf16>
    %c0_8 = arith.constant 0 : index
    %c0_9 = arith.constant 0 : index
    %12 = vector.load %arg4[%c0_8, %c0_9] : memref<128x128xf32, #tpu.memory_space<vmem>>, vector<128x128xf32>
    %13 = arith.truncf %12 : vector<128x128xf32> to vector<128x128xbf16>
    %cst_10 = arith.constant dense<0.000000e+00> : vector<8x128xf32>
    %14 = tpu.matmul %11, %13, %cst_10 {dimension_numbers = #tpu.dot_dimension_numbers<[1], [0], [0], [1], [0, 0, 1, 1], [], []>} : vector<8x128xbf16>, vector<128x128xbf16>, vector<8x128xf32> -> vector<8x128xf32>
    %c0_11 = arith.constant 0 : index
    %c0_12 = arith.constant 0 : index
    %15 = vector.load %arg5[%c0_11, %c0_12] : memref<1x128xf32, #tpu.memory_space<vmem>>, vector<1x128xf32>
    %16 = vector.broadcast %15 : vector<1x128xf32> to vector<8x128xf32>
    %17 = arith.addf %14, %16 : vector<8x128xf32>
    %c0_13 = arith.constant 0 : index
    %c0_14 = arith.constant 0 : index
    %18 = vector.load %arg7[%c0_13, %c0_14] : memref<8x128xf32, #tpu.memory_space<vmem>>, vector<8x128xf32>
    tpu.vector_store %arg7[%c0_13, %c0_14], %17 {strides = array<i32>} : memref<8x128xf32, #tpu.memory_space<vmem>>, vector<8x128xf32>,
    return
  }
  func.func @transform_0(%arg0: i32) -> (i32, i32) {
    %c0_i32 = arith.constant 0 : i32
    %c0_i32_0 = arith.constant 0 : i32
    return %arg0, %c0_i32 : i32, i32
  }
  func.func @transform_1(%arg0: i32) -> (i32, i32) {
    %c0_i32 = arith.constant 0 : i32
    %c0_i32_0 = arith.constant 0 : i32
    %c0_i32_1 = arith.constant 0 : i32
    return %c0_i32, %c0_i32_0 : i32, i32
  }
  func.func @transform_2(%arg0: i32) -> (i32, i32) {
    %c0_i32 = arith.constant 0 : i32
    %c0_i32_0 = arith.constant 0 : i32
    %c0_i32_1 = arith.constant 0 : i32
    return %c0_i32, %c0_i32_0 : i32, i32
  }
  func.func @transform_3(%arg0: i32) -> (i32, i32) {
    %c0_i32 = arith.constant 0 : i32
    %c0_i32_0 = arith.constant 0 : i32
    %c0_i32_1 = arith.constant 0 : i32
    return %c0_i32, %c0_i32_0 : i32, i32
  }
  func.func @transform_4(%arg0: i32) -> (i32, i32) {
    %c0_i32 = arith.constant 0 : i32
    %c0_i32_0 = arith.constant 0 : i32
    %c0_i32_1 = arith.constant 0 : i32
    return %c0_i32, %c0_i32_0 : i32, i32
  }
  func.func @transform_5(%arg0: i32) -> (i32, i32) {
    %c0_i32 = arith.constant 0 : i32
    %c0_i32_0 = arith.constant 0 : i32
    return %arg0, %c0_i32 : i32, i32
  }
  func.func @transform_6(%arg0: i32) -> (i32, i32) {
    %c0_i32 = arith.constant 0 : i32
    %c0_i32_0 = arith.constant 0 : i32
    return %arg0, %c0_i32 : i32, i32
  }
}

</mosaic_0001>

<llo_original>
// kernel: encoder_forward.1
$region0: #{encoder_forward.1}
  #allocation0 [shape = 'u32[]', space=smem, size = 0x4, offset = 0x4, fixed_abs, tag = 'smem constant byte address 0x4 - core index']
  #allocation1 [shape = 'u32[72,128]{1,0:T(1,128)}', space=vmem, size = 0x9000, scoped, tag = 'internal scratch']
  %s0 = inlined_call_operand.vmem [shape: f32[8,128], index: 0, kind: input, shape index: {}]
  %s1 = inlined_call_operand.vmem [shape: f32[128,128], index: 1, kind: input, shape index: {}]
  %s2 = inlined_call_operand.vmem [shape: f32[1,128], index: 2, kind: input, shape index: {}]
  %s3 = inlined_call_operand.vmem [shape: f32[128,128], index: 3, kind: input, shape index: {}]
  %s4 = inlined_call_operand.vmem [shape: f32[1,128], index: 4, kind: input, shape index: {}]
  %s5 = inlined_call_operand.hbm [shape: f32[8,128], index: 5, kind: output, shape index: {0}]
  %s6 = inlined_call_operand.hbm [shape: f32[8,128], index: 6, kind: output, shape index: {1}]
  %7 = xla_tuple %s5, %s6
  %s8 = sld [smem:[#allocation0]]
  $region38: #{encoder_forward.1} parent=0
    _
  %s10 = ssub.s32 1, %s8
  %s11 = scalar_select 0, %s10, %s8
  $region1: #{encoder_forward.1} parent=0
    #allocation2 [shape = 'u8[4096]{0}', space=vmem, size = 0x1000, scoped, tag = 'output window, operand 0, single buffered']
    #allocation3 [shape = 's32[1]{0}', space=sflag, size = 0x4, scoped, tag = 'scoped memory for encoder_forward.1']
    #allocation4 [shape = 'u8[4096]{0}', space=vmem, size = 0x1000, scoped, tag = 'output window, operand 1, single buffered']
    #allocation5 [shape = 's32[1]{0}', space=sflag, size = 0x4, scoped, tag = 'scoped memory for encoder_forward.1']
    %12 = vsyncpa [#allocation3], 0
    %13 = vsyncpa [#allocation5], 0
    // Predicated region
    $region2: #{encoder_forward.1} parent=1 // pred_check
      _
    $region3: #{encoder_forward.1} parent=1 // pred_check_branch
      %15 = sbr.rel (0) target = $region5
    $region4: #{encoder_forward.1} parent=1 // pred_region
      _
    $region5: #{encoder_forward.1} parent=1 // pred_fallthru
      _
    // Predicated region
    $region6: #{encoder_forward.1} parent=1 // pred_check
      _
    $region7: #{encoder_forward.1} parent=1 // pred_check_branch
      %17 = sbr.rel (0) target = $region9
    $region8: #{encoder_forward.1} parent=1 // pred_region
      _
    $region9: #{encoder_forward.1} parent=1 // pred_fallthru
      _
    // Predicated region
    $region10: #{encoder_forward.1} parent=1 // pred_check
      _
    $region11: #{encoder_forward.1} parent=1 // pred_check_branch
      %19 = sbr.rel (0) target = $region13
    $region12: #{encoder_forward.1} parent=1 // pred_region
      _
    $region13: #{encoder_forward.1} parent=1 // pred_fallthru
      _
    // Predicated region
    $region14: #{encoder_forward.1} parent=1 // pred_check
      _
    $region15: #{encoder_forward.1} parent=1 // pred_check_branch
      %21 = sbr.rel (0) target = $region17
    $region16: #{encoder_forward.1} parent=1 // pred_region
      _
    $region17: #{encoder_forward.1} parent=1 // pred_fallthru
      _
    // Predicated region
    $region18: #{encoder_forward.1} parent=1 // pred_check
      _
    $region19: #{encoder_forward.1} parent=1 // pred_check_branch
      %23 = sbr.rel (0) target = $region21
    $region20: #{encoder_forward.1} parent=1 // pred_region
      _
    $region21: #{encoder_forward.1} parent=1 // pred_fallthru
      _
    %v24 = vld [vmem:[%s0] sm:$0xff]
    %v25 = vpack.c.bf16 %v24, %v24
    %v26 = vld [vmem:[%s1] sm:$0xff]
    %v27 = vld [vmem:[%s1 + $0x8] sm:$0xff]
    %v28 = vld [vmem:[%s1 + $0x10] sm:$0xff]
    %v29 = vld [vmem:[%s1 + $0x18] sm:$0xff]
    %v30 = vld [vmem:[%s1 + $0x20] sm:$0xff]
    %v31 = vld [vmem:[%s1 + $0x28] sm:$0xff]
    %v32 = vld [vmem:[%s1 + $0x30] sm:$0xff]
    %v33 = vld [vmem:[%s1 + $0x38] sm:$0xff]
    %v34 = vld [vmem:[%s1 + $0x40] sm:$0xff]
    %v35 = vld [vmem:[%s1 + $0x48] sm:$0xff]
    %v36 = vld [vmem:[%s1 + $0x50] sm:$0xff]
    %v37 = vld [vmem:[%s1 + $0x58] sm:$0xff]
    %v38 = vld [vmem:[%s1 + $0x60] sm:$0xff]
    %v39 = vld [vmem:[%s1 + $0x68] sm:$0xff]
    %v40 = vld [vmem:[%s1 + $0x70] sm:$0xff]
    %v41 = vld [vmem:[%s1 + $0x78] sm:$0xff]
    %v42 = vpack.c.bf16 %v27, %v26
    %v43 = vpack.c.bf16 %v29, %v28
    %v44 = vpack.c.bf16 %v31, %v30
    %v45 = vpack.c.bf16 %v33, %v32
    %v46 = vpack.c.bf16 %v35, %v34
    %v47 = vpack.c.bf16 %v37, %v36
    %v48 = vpack.c.bf16 %v39, %v38
    %v49 = vpack.c.bf16 %v41, %v40
    %v50 = vld [vmem:[%s2] sm:$0x1]
    %v52 = vperm.slane %v50, 0
    %54 = vmatpush.bf16.msra.mxu0 %v49
    %55 = vmatpush.bf16.msra.mxu0 %v48
    %56 = vmatpush.bf16.msra.mxu0 %v47
    %57 = vmatpush.bf16.msra.mxu0 %v46
    %58 = vmatpush.bf16.msra.mxu0 %v45
    %59 = vmatpush.bf16.msra.mxu0 %v44
    %60 = vmatpush.bf16.msra.mxu0 %v43
    %61 = vmatpush.bf16.msra.mxu0 %v42
    %62 = vmatmul.bf16.gmra.mxu0 %v25
    %v63 = vpop.f32.mrf.mxu0
    %v64 = vadd.f32 %v52, %v63
    %v65 = vpop.f32.mrf.mxu0
    %66 = vdwg.mxu0
    %v67 = vmax.f32 %v64, 0.0
    %68 = vst [vmem:[#allocation2] sm:$0xff] %v67
    %v69 = vpack.c.bf16 %v67, %v67
    %v70 = vld [vmem:[%s3] sm:$0xff]
    %v71 = vld [vmem:[%s3 + $0x8] sm:$0xff]
    %v72 = vld [vmem:[%s3 + $0x10] sm:$0xff]
    %v73 = vld [vmem:[%s3 + $0x18] sm:$0xff]
    %v74 = vld [vmem:[%s3 + $0x20] sm:$0xff]
    %v75 = vld [vmem:[%s3 + $0x28] sm:$0xff]
    %v76 = vld [vmem:[%s3 + $0x30] sm:$0xff]
    %v77 = vld [vmem:[%s3 + $0x38] sm:$0xff]
    %v78 = vld [vmem:[%s3 + $0x40] sm:$0xff]
    %v79 = vld [vmem:[%s3 + $0x48] sm:$0xff]
    %v80 = vld [vmem:[%s3 + $0x50] sm:$0xff]
    %v81 = vld [vmem:[%s3 + $0x58] sm:$0xff]
    %v82 = vld [vmem:[%s3 + $0x60] sm:$0xff]
    %v83 = vld [vmem:[%s3 + $0x68] sm:$0xff]
    %v84 = vld [vmem:[%s3 + $0x70] sm:$0xff]
    %v85 = vld [vmem:[%s3 + $0x78] sm:$0xff]
    %v86 = vpack.c.bf16 %v71, %v70
    %v87 = vpack.c.bf16 %v73, %v72
    %v88 = vpack.c.bf16 %v75, %v74
    %v89 = vpack.c.bf16 %v77, %v76
    %v90 = vpack.c.bf16 %v79, %v78
    %v91 = vpack.c.bf16 %v81, %v80
    %v92 = vpack.c.bf16 %v83, %v82
    %v93 = vpack.c.bf16 %v85, %v84
    %v94 = vld [vmem:[%s4] sm:$0x1]
    %v96 = vperm.slane %v94, 0
    %98 = vmatpush.bf16.msra.mxu0 %v93
    %99 = vmatpush.bf16.msra.mxu0 %v92
    %100 = vmatpush.bf16.msra.mxu0 %v91
    %101 = vmatpush.bf16.msra.mxu0 %v90
    %102 = vmatpush.bf16.msra.mxu0 %v89
    %103 = vmatpush.bf16.msra.mxu0 %v88
    %104 = vmatpush.bf16.msra.mxu0 %v87
    %105 = vmatpush.bf16.msra.mxu0 %v86
    %106 = vmatmul.bf16.gmra.mxu0 %v69
    %v107 = vpop.f32.mrf.mxu0
    %v108 = vadd.f32 %v96, %v107
    %v109 = vpop.f32.mrf.mxu0
    %110 = vdwg.mxu0
    %111 = vst [vmem:[#allocation4] sm:$0xff] %v108
    // Predicated region
    $region22: #{encoder_forward.1} parent=1 // pred_check
      _
    $region23: #{encoder_forward.1} parent=1 // pred_check_branch
      %113 = sbr.rel (0) target = $region25
    $region24: #{encoder_forward.1} parent=1 // pred_region
      %115 = vsyncadd [#allocation3], 0
      %s117 = sshll.u32 [#allocation2], 4
      %s118 = int_to_ptr.vmem [resolvable:$true] %s117
      %s119 = sshll.u32 %s5, 4
      %s120 = int_to_ptr.hbm [resolvable:$true] %s119
      %122 = dma.vmem_to_hbm [thread:$0]  %s118, 128, %s120, [#allocation3]
    $region25: #{encoder_forward.1} parent=1 // pred_fallthru
      _
    // Predicated region
    $region26: #{encoder_forward.1} parent=1 // pred_check
      _
    $region27: #{encoder_forward.1} parent=1 // pred_check_branch
      %124 = sbr.rel (0) target = $region29
    $region28: #{encoder_forward.1} parent=1 // pred_region
      %126 = vsyncadd [#allocation5], 0
      %s128 = sshll.u32 [#allocation4], 4
      %s129 = int_to_ptr.vmem [resolvable:$true] %s128
      %s130 = sshll.u32 %s6, 4
      %s131 = int_to_ptr.hbm [resolvable:$true] %s130
      %133 = dma.vmem_to_hbm [thread:$0]  %s129, 128, %s131, [#allocation5]
    $region29: #{encoder_forward.1} parent=1 // pred_fallthru
      _
    // Predicated region
    $region30: #{encoder_forward.1} parent=1 // pred_check
      _
    $region31: #{encoder_forward.1} parent=1 // pred_check_branch
      %135 = sbr.rel (0) target = $region33
    $region32: #{encoder_forward.1} parent=1 // pred_region
      %137 = dma.done [#allocation3], 128
    $region33: #{encoder_forward.1} parent=1 // pred_fallthru
      _
    // Predicated region
    $region34: #{encoder_forward.1} parent=1 // pred_check
      _
    $region35: #{encoder_forward.1} parent=1 // pred_check_branch
      %139 = sbr.rel (0) target = $region37
    $region36: #{encoder_forward.1} parent=1 // pred_region
      %141 = dma.done [#allocation5], 128
    $region37: #{encoder_forward.1} parent=1 // pred_fallthru
      _
    %142 = vsyncpa [#allocation3], 1
    %143 = vsyncpa [#allocation5], 1

</llo_original>
